<compile_context>
chip_gen: v7x
topology: tpu7x:2x2x1
jax: 0.10.0
libtpu: 0.0.40
codegen_flags: <defaults>
</compile_context>

<pallas_src>
import math
from functools import partial

import jax
import jax.numpy as jnp
from jax.experimental import pallas as pl
from jax.experimental.pallas import tpu as pltpu


def _round_up(x, m):
    return ((x + m - 1) // m) * m


def _projection_kernel(x_ref, w_ref, b_ref, o_ref, m_ref, l_ref):
    # x_ref: (TM, D)   w_ref: (TN, D)   b_ref: (1, TN) f32
    # o_ref: (TM, V_pad)  -- resident across the vocab grid axis
    # m_ref/l_ref: (TM, 1) f32 running max / running sum-of-exp
    j = pl.program_id(1)
    tn = w_ref.shape[0]

    @pl.when(j == 0)
    def _init():
        m_ref[...] = jnp.full(m_ref.shape, -jnp.inf, dtype=m_ref.dtype)
        l_ref[...] = jnp.zeros(l_ref.shape, dtype=l_ref.dtype)

    # (TM, TN) logits tile: contract d_model of x with d_model of the weight
    # tile (== x @ w_tile.T), so the weight never needs an HBM transpose copy.
    logits = jax.lax.dot_general(
        x_ref[...],
        w_ref[...],
        dimension_numbers=(((1,), (1,)), ((), ())),
        preferred_element_type=jnp.float32,
    ) + b_ref[...]

    # Online logsumexp update (flash-style).
    m_prev = m_ref[...]
    m_new = jnp.maximum(m_prev, jnp.max(logits, axis=-1, keepdims=True))
    l_ref[...] = l_ref[...] * jnp.exp(m_prev - m_new) + jnp.sum(
        jnp.exp(logits - m_new), axis=-1, keepdims=True)
    m_ref[...] = m_new

    # Stage raw logits into the resident output slab (lane-aligned store).
    col = pl.multiple_of(j * tn, 128)
    o_ref[:, pl.ds(col, tn)] = logits.astype(o_ref.dtype)

    # Final correction once all vocab tiles were seen: logits - logsumexp.
    @pl.when(j == pl.num_programs(1) - 1)
    def _finalize():
        lse = m_ref[...] + jnp.log(l_ref[...])
        o_ref[...] = (o_ref[...].astype(jnp.float32) - lse).astype(o_ref.dtype)


def projection_layer(x, weight, bias, *, tile_rows=256, tile_vocab=512,
                     out_dtype=jnp.float32, compute_dtype=None):
    """log_softmax(x @ weight.T + bias, axis=-1).

    x:      (B, S, d_model)
    weight: (vocab, d_model)   (PyTorch nn.Linear layout, NOT pre-transposed)
    bias:   (vocab,)
    """
    B, S, d_model = x.shape
    vocab = weight.shape[0]
    rows = B * S

    if compute_dtype is not None:
        # e.g. jnp.bfloat16: ~2x MXU throughput / weight-stream bandwidth on
        # v5e/v6e; accumulation and softmax remain f32 inside the kernel.
        x = x.astype(compute_dtype)
        weight = weight.astype(compute_dtype)

    x2d = x.reshape(rows, d_model)
    b2d = bias.astype(jnp.float32).reshape(1, vocab)   # hoisted bias cast

    # Vocab tile: 128-aligned, clamped for small vocabularies.
    tn = min(_round_up(tile_vocab, 128), _round_up(vocab, 128))
    v_pad = _round_up(vocab, tn)

    # Row tile: 8-aligned, clamped for small inputs, and clamped so the
    # resident (tm, v_pad) f32 output slab stays within a conservative VMEM
    # budget (keeps the kernel safe on v7x's 64 MiB VMEM with large vocabs).
    slab_budget_bytes = 20 * 1024 * 1024
    max_tm_vmem = max(8, (slab_budget_bytes // (v_pad * 4)) // 8 * 8)
    tm = min(_round_up(tile_rows, 8), _round_up(rows, 8), max_tm_vmem)
    r_pad = _round_up(rows, tm)

    if r_pad != rows:
        x2d = jnp.pad(x2d, ((0, r_pad - rows), (0, 0)))
    if v_pad != vocab:
        weight = jnp.pad(weight, ((0, v_pad - vocab), (0, 0)))
        # Huge negative bias -> padded columns contribute exp(.) == 0 to LSE.
        b2d = jnp.pad(b2d, ((0, 0), (0, v_pad - vocab)), constant_values=-1e30)

    grid = (r_pad // tm, v_pad // tn)

    cost = pl.CostEstimate(
        flops=2 * rows * d_model * vocab,
        transcendentals=rows * vocab,          # exp in the online LSE
        bytes_accessed=(x2d.size * x2d.dtype.itemsize
                        + weight.size * weight.dtype.itemsize
                        + b2d.size * b2d.dtype.itemsize
                        + r_pad * v_pad * jnp.dtype(out_dtype).itemsize),
    )

    out = pl.pallas_call(
        _projection_kernel,
        out_shape=jax.ShapeDtypeStruct((r_pad, v_pad), out_dtype),
        grid_spec=pltpu.PrefetchScalarGridSpec(
            num_scalar_prefetch=0,
            grid=grid,
            in_specs=[
                # x row tile: resident across the inner (vocab) grid axis.
                pl.BlockSpec((tm, d_model), lambda i, j: (i, 0)),
                # weight tile stream along vocab (PyTorch layout, no transpose).
                pl.BlockSpec((tn, d_model), lambda i, j: (j, 0)),
                # bias tile stream along vocab.
                pl.BlockSpec((1, tn), lambda i, j: (0, j)),
            ],
            # Output block resident across the vocab (reduction) axis.
            out_specs=pl.BlockSpec((tm, v_pad), lambda i, j: (i, 0)),
            scratch_shapes=[
                pltpu.VMEM((tm, 1), jnp.float32),   # running max
                pltpu.VMEM((tm, 1), jnp.float32),   # running sum-of-exp
            ],
        ),
        compiler_params=pltpu.CompilerParams(
            dimension_semantics=("parallel", "arbitrary"),
            vmem_limit_bytes=64 * 1024 * 1024,
        ),
        cost_estimate=cost,
    )(x2d, weight, b2d)

    return out[:rows, :vocab].reshape(B, S, vocab)


def _reference(x, weight, bias):
    logits = jnp.einsum("bsd,vd->bsv", x, weight) + bias
    return jax.nn.log_softmax(logits, axis=-1)


if __name__ == "__main__":
    # Small shapes consistent with the module's forward.  vocab=300 with
    # tile_vocab=128 deliberately exercises the multi-tile online-LSE path and
    # the ragged-vocab padding (300 -> 384, padded columns masked via -1e30).
    batch, seq, d_model, vocab = 2, 8, 32, 300

    key = jax.random.PRNGKey(0)
    kx, kw, kb = jax.random.split(key, 3)

    x = jax.random.normal(kx, (batch, seq, d_model), dtype=jnp.float32)

    # Deterministic init mimicking nn.Linear's default (Kaiming-uniform style).
    bound = 1.0 / math.sqrt(d_model)
    weight = jax.random.uniform(
        kw, (vocab, d_model), minval=-bound, maxval=bound, dtype=jnp.float32)
    bias = jax.random.uniform(
        kb, (vocab,), minval=-bound, maxval=bound, dtype=jnp.float32)

    fn = jax.jit(partial(projection_layer, tile_rows=128, tile_vocab=128))
    out = jax.block_until_ready(fn(x, weight, bias))

    ref = _reference(x, weight, bias)
    assert out.shape == (batch, seq, vocab)
    assert jnp.allclose(out, ref, atol=2e-5, rtol=2e-5), float(
        jnp.max(jnp.abs(out - ref)))

    print("KERNEL_OK")
</pallas_src>

<mosaic_0001>
module attributes {stable_mosaic.version = 11 : i64} {
  func.func @_projection_kernel(%arg0: i32, %arg1: i32, %arg2: memref<16x32xf32, #tpu.memory_space<vmem>>, %arg3: memref<128x32xf32, #tpu.memory_space<vmem>>, %arg4: memref<1x128xf32, #tpu.memory_space<vmem>>, %arg5: memref<16x384xf32, #tpu.memory_space<vmem>>, %arg6: memref<16x1xf32, #tpu.memory_space<vmem>>, %arg7: memref<16x1xf32, #tpu.memory_space<vmem>>) attributes {dimension_semantics = [#tpu.dimension_semantics<parallel>, #tpu.dimension_semantics<arbitrary>], iteration_bounds = array<i64: 1, 3>, scalar_prefetch = 0 : i64, scratch_operands = 2 : i64, tpu.core_type = #tpu.core_type<tc>, window_params = [{transform_indices = @transform_0, window_bounds = array<i64: 16, 32>}, {transform_indices = @transform_1, window_bounds = array<i64: 128, 32>}, {transform_indices = @transform_2, window_bounds = array<i64: 1, 128>}, {transform_indices = @transform_3, window_bounds = array<i64: 16, 384>}]} {
    %c0_i32 = arith.constant 0 : i32
    %0 = arith.cmpi eq, %arg1, %c0_i32 : i32
    %1 = arith.extui %0 : i1 to i32
    %c0_i32_0 = arith.constant 0 : i32
    %2 = arith.cmpi ne, %1, %c0_i32_0 : i32
    scf.if %2 {
      %cst_18 = arith.constant 0xFF800000 : f32
      %32 = vector.broadcast %cst_18 : f32 to vector<16x1xf32>
      %c0_19 = arith.constant 0 : index
      %c0_20 = arith.constant 0 : index
      %33 = vector.load %arg6[%c0_19, %c0_20] : memref<16x1xf32, #tpu.memory_space<vmem>>, vector<16x1xf32>
      tpu.vector_store %arg6[%c0_19, %c0_20], %32 {strides = array<i32>} : memref<16x1xf32, #tpu.memory_space<vmem>>, vector<16x1xf32>,
      %cst_21 = arith.constant 0.000000e+00 : f32
      %34 = vector.broadcast %cst_21 : f32 to vector<16x1xf32>
      %c0_22 = arith.constant 0 : index
      %c0_23 = arith.constant 0 : index
      %35 = vector.load %arg7[%c0_22, %c0_23] : memref<16x1xf32, #tpu.memory_space<vmem>>, vector<16x1xf32>
      tpu.vector_store %arg7[%c0_22, %c0_23], %34 {strides = array<i32>} : memref<16x1xf32, #tpu.memory_space<vmem>>, vector<16x1xf32>,
    } else {
    }
    %c0 = arith.constant 0 : index
    %c0_1 = arith.constant 0 : index
    %3 = vector.load %arg2[%c0, %c0_1] : memref<16x32xf32, #tpu.memory_space<vmem>>, vector<16x32xf32>
    %c0_2 = arith.constant 0 : index
    %c0_3 = arith.constant 0 : index
    %4 = vector.load %arg3[%c0_2, %c0_3] : memref<128x32xf32, #tpu.memory_space<vmem>>, vector<128x32xf32>
    %cst = arith.constant dense<0.000000e+00> : vector<16x128xf32>
    %5 = tpu.matmul %3, %4, %cst {dimension_numbers = #tpu.dot_dimension_numbers<[1], [1], [0], [0], [0, 0, 1, 0], [], []>} : vector<16x32xf32>, vector<128x32xf32>, vector<16x128xf32> -> vector<16x128xf32>
    %c0_4 = arith.constant 0 : index
    %c0_5 = arith.constant 0 : index
    %6 = vector.load %arg4[%c0_4, %c0_5] : memref<1x128xf32, #tpu.memory_space<vmem>>, vector<1x128xf32>
    %7 = vector.broadcast %6 : vector<1x128xf32> to vector<16x128xf32>
    %8 = arith.addf %5, %7 : vector<16x128xf32>
    %c0_6 = arith.constant 0 : index
    %c0_7 = arith.constant 0 : index
    %9 = vector.load %arg6[%c0_6, %c0_7] : memref<16x1xf32, #tpu.memory_space<vmem>>, vector<16x1xf32>
    %cst_8 = arith.constant dense<0xFF800000> : vector<16xf32>
    %10 = vector.multi_reduction <maximumf>, %8, %cst_8 [1] : vector<16x128xf32> to vector<16xf32>
    %11 = vector.shape_cast %10 : vector<16xf32> to vector<16x1xf32>
    %12 = arith.maximumf %9, %11 : vector<16x1xf32>
    %c0_9 = arith.constant 0 : index
    %c0_10 = arith.constant 0 : index
    %13 = vector.load %arg7[%c0_9, %c0_10] : memref<16x1xf32, #tpu.memory_space<vmem>>, vector<16x1xf32>
    %14 = arith.subf %9, %12 : vector<16x1xf32>
    %15 = math.exp %14 : vector<16x1xf32>
    %16 = arith.mulf %13, %15 : vector<16x1xf32>
    %17 = vector.broadcast %12 : vector<16x1xf32> to vector<16x128xf32>
    %18 = arith.subf %8, %17 : vector<16x128xf32>
    %19 = math.exp %18 : vector<16x128xf32>
    %cst_11 = arith.constant dense<0.000000e+00> : vector<16xf32>
    %20 = vector.multi_reduction <add>, %19, %cst_11 [1] : vector<16x128xf32> to vector<16xf32>
    %21 = vector.shape_cast %20 : vector<16xf32> to vector<16x1xf32>
    %22 = arith.addf %16, %21 : vector<16x1xf32>
    %c0_12 = arith.constant 0 : index
    %c0_13 = arith.constant 0 : index
    %23 = vector.load %arg7[%c0_12, %c0_13] : memref<16x1xf32, #tpu.memory_space<vmem>>, vector<16x1xf32>
    tpu.vector_store %arg7[%c0_12, %c0_13], %22 {strides = array<i32>} : memref<16x1xf32, #tpu.memory_space<vmem>>, vector<16x1xf32>,
    %c0_14 = arith.constant 0 : index
    %c0_15 = arith.constant 0 : index
    %24 = vector.load %arg6[%c0_14, %c0_15] : memref<16x1xf32, #tpu.memory_space<vmem>>, vector<16x1xf32>
    tpu.vector_store %arg6[%c0_14, %c0_15], %12 {strides = array<i32>} : memref<16x1xf32, #tpu.memory_space<vmem>>, vector<16x1xf32>,
    %c128_i32 = arith.constant 128 : i32
    %25 = arith.muli %arg1, %c128_i32 : i32
    %26 = tpu.assume_multiple %25, 128 : i32
    %c0_16 = arith.constant 0 : index
    %27 = arith.index_cast %26 : i32 to index
    %28 = vector.load %arg5[%c0_16, %27] : memref<16x384xf32, #tpu.memory_space<vmem>>, vector<16x128xf32>
    tpu.vector_store %arg5[%c0_16, %27], %8 {strides = array<i32>} : memref<16x384xf32, #tpu.memory_space<vmem>>, vector<16x128xf32>,
    %c2_i32 = arith.constant 2 : i32
    %29 = arith.cmpi eq, %arg1, %c2_i32 : i32
    %30 = arith.extui %29 : i1 to i32
    %c0_i32_17 = arith.constant 0 : i32
    %31 = arith.cmpi ne, %30, %c0_i32_17 : i32
    scf.if %31 {
      %c0_18 = arith.constant 0 : index
      %c0_19 = arith.constant 0 : index
      %32 = vector.load %arg6[%c0_18, %c0_19] : memref<16x1xf32, #tpu.memory_space<vmem>>, vector<16x1xf32>
      %c0_20 = arith.constant 0 : index
      %c0_21 = arith.constant 0 : index
      %33 = vector.load %arg7[%c0_20, %c0_21] : memref<16x1xf32, #tpu.memory_space<vmem>>, vector<16x1xf32>
      %34 = math.log %33 : vector<16x1xf32>
      %35 = arith.addf %32, %34 : vector<16x1xf32>
      %c0_22 = arith.constant 0 : index
      %c0_23 = arith.constant 0 : index
      %36 = vector.load %arg5[%c0_22, %c0_23] : memref<16x384xf32, #tpu.memory_space<vmem>>, vector<16x384xf32>
      %37 = vector.broadcast %35 : vector<16x1xf32> to vector<16x384xf32>
      %38 = arith.subf %36, %37 : vector<16x384xf32>
      %c0_24 = arith.constant 0 : index
      %c0_25 = arith.constant 0 : index
      %39 = vector.load %arg5[%c0_24, %c0_25] : memref<16x384xf32, #tpu.memory_space<vmem>>, vector<16x384xf32>
      tpu.vector_store %arg5[%c0_24, %c0_25], %38 {strides = array<i32>} : memref<16x384xf32, #tpu.memory_space<vmem>>, vector<16x384xf32>,
    } else {
    }
    return
  }
  func.func @transform_0(%arg0: i32, %arg1: i32) -> (i32, i32) {
    %c0_i32 = arith.constant 0 : i32
    %c0_i32_0 = arith.constant 0 : i32
    return %arg0, %c0_i32 : i32, i32
  }
  func.func @transform_1(%arg0: i32, %arg1: i32) -> (i32, i32) {
    %c0_i32 = arith.constant 0 : i32
    %c0_i32_0 = arith.constant 0 : i32
    return %arg1, %c0_i32 : i32, i32
  }
  func.func @transform_2(%arg0: i32, %arg1: i32) -> (i32, i32) {
    %c0_i32 = arith.constant 0 : i32
    %c0_i32_0 = arith.constant 0 : i32
    return %c0_i32, %arg1 : i32, i32
  }
  func.func @transform_3(%arg0: i32, %arg1: i32) -> (i32, i32) {
    %c0_i32 = arith.constant 0 : i32
    %c0_i32_0 = arith.constant 0 : i32
    return %arg0, %c0_i32 : i32, i32
  }
}

</mosaic_0001>

<llo_original>
// kernel: projection_layer.1
$region0: #{projection_layer.1}
  #allocation0 [shape = 'u32[]', space=smem, size = 0x4, offset = 0x4, fixed_abs, tag = 'smem constant byte address 0x4 - core index']
  #allocation1 [shape = 'u32[144,128]{1,0:T(1,128)}', space=vmem, size = 0x12000, scoped, tag = 'internal scratch']
  #allocation2 [shape = 'f32[16,1]{1,0:T(8,128)}', space=vmem, size = 0x2000, scoped, tag = 'scratch operand']
  #allocation3 [shape = 'f32[16,1]{1,0:T(8,128)}', space=vmem, size = 0x2000, scoped, tag = 'scratch operand']
  %s0 = inlined_call_operand.hbm [shape: f32[16,32], index: 0, kind: input, shape index: {}]
  %s1 = inlined_call_operand.hbm [shape: f32[384,32], index: 1, kind: input, shape index: {}]
  %s2 = inlined_call_operand.hbm [shape: f32[1,384], index: 2, kind: input, shape index: {}]
  %s3 = inlined_call_operand.hbm [shape: f32[16,384], index: 3, kind: output, shape index: {}]
  %s4 = sld [smem:[#allocation0]]
  $region65: #{projection_layer.1} parent=0
    _
  %s6 = ssub.s32 1, %s4
  %s7 = scalar_select 0, %s6, %s4
  $region1: #{projection_layer.1} parent=0
    #allocation4 [shape = 'u8[8192]{0}', space=vmem, size = 0x2000, scoped, tag = 'input window, operand 0, single buffered']
    #allocation5 [shape = 's32[2]{0}', space=sflag, size = 0x8, scoped, tag = 'scoped memory for projection_layer.1']
    #allocation6 [shape = 's32[2]{0}', space=sflag, size = 0x8, scoped, tag = 'scoped memory for projection_layer.1']
    #allocation7 [shape = 'u8[131072]{0}', space=vmem, size = 0x20000, scoped, tag = 'input window, operand 1']
    #allocation8 [shape = 's32[2]{0}', space=sflag, size = 0x8, scoped, tag = 'scoped memory for projection_layer.1']
    #allocation9 [shape = 'u8[1024]{0}', space=vmem, size = 0x400, scoped, tag = 'input window, operand 2']
    #allocation10 [shape = 'u8[24576]{0}', space=vmem, size = 0x6000, scoped, tag = 'output window, operand 0, single buffered']
    %8 = vsyncpa [#allocation5], 0
    %9 = vsyncpa [#allocation8], 0
    %s10 = scalar_lea.sflag [#allocation8], 1
    %11 = vsyncpa %s10, 0
    %12 = vsyncpa [#allocation6], 0
    loop: start=0, step=1, limit=5
    $region2: #{projection_layer.1} parent=1 // loop_pre_header
      _
    $region3: #{projection_layer.1} parent=1 // loop_header
      %s14 = sphi 0, %s18
      %p15 = scmp.ge.s32.totalorder %s14, 5
      %s21 = sphi 0, %s33
      %s22 = sphi 0, %s29
      %s23 = sphi 0, %s21
      %s24 = sphi 0, %s22
      %s25 = sphi 0, %s23
      %s26 = sphi 0, %s24
      %s36 = sphi 0, %s38
      %s39 = sphi 0, %s36
      %s40 = sphi 0, %s39
      %s56 = sphi 0, %s40
      %s62 = sphi 0, %s64
      %s65 = sphi 0, %s62
      %s66 = sphi 0, %s65
      %s82 = sphi 0, %s66
      %s88 = sphi 0, %s90
      %s91 = sphi 0, %s88
      %s92 = sphi 0, %s91
      %s108 = sphi 0, %s92
      %s114 = sphi 0, %s116
      %s117 = sphi 0, %s114
      %s118 = sphi 0, %s117
      %s134 = sphi 0, %s118
    $region4: #{projection_layer.1} parent=1 // loop_header_branch
      %17 = sbr.rel (%p15) target = $region8
    $region5: #{projection_layer.1} parent=1 // loop_body
      %s19 = ssub.s32 %s14, 1
      %s20 = ssub.s32 %s14, 2
      %s27 = sadd.s32 1, %s22
      %p28 = scmp.ge.s32.totalorder %s27, 3
      %s29 = scalar_select %p28, 0, %s27
      %s30 = sadd.s32 1, %s21
      %s31 = scalar_select %p28, %s30, %s21
      %p32 = scmp.ge.s32.totalorder %s31, 1
      %s33 = scalar_select %p32, 0, %s31
      %s34 = ssub.s32 %s21, %s33
      %p35 = scmp.eq.s32.totalorder %s34, 0
      %s37 = sadd.s32 %s36, 1
      %s38 = scalar_select %p35, %s36, %s37
      %p41 = pneg %p35
      %p42 = scmp.eq.s32.totalorder %s14, 2
      %p43 = por %p41, %p42
      %p44 = scmp.ne.s32.totalorder %s36, %s39
      %p45 = scmp.eq.s32.totalorder %s14, 0
      %p46 = por %p44, %p45
      %p47 = scmp.ne.s32.totalorder %s36, %s39
      %p48 = scmp.eq.s32.totalorder %s19, 2
      %p49 = por %p47, %p48
      %p50 = scmp.ne.s32.totalorder %s39, %s40
      %p51 = scmp.eq.s32.totalorder %s19, 0
      %p52 = por %p50, %p51
      %p53 = scmp.ne.s32.totalorder %s39, %s40
      %p54 = scmp.eq.s32.totalorder %s20, 2
      %p55 = por %p53, %p54
      %p57 = scmp.ne.s32.totalorder %s40, %s56
      %p58 = scmp.eq.s32.totalorder %s20, 0
      %p59 = por %p57, %p58
      %s60 = ssub.s32 %s22, %s29
      %p61 = scmp.eq.s32.totalorder %s60, 0
      %s63 = sadd.s32 %s62, 1
      %s64 = scalar_select %p61, %s62, %s63
      %p67 = pneg %p61
      %p68 = scmp.eq.s32.totalorder %s14, 2
      %p69 = por %p67, %p68
      %p70 = scmp.ne.s32.totalorder %s62, %s65
      %p71 = scmp.eq.s32.totalorder %s14, 0
      %p72 = por %p70, %p71
      %p73 = scmp.ne.s32.totalorder %s62, %s65
      %p74 = scmp.eq.s32.totalorder %s19, 2
      %p75 = por %p73, %p74
      %p76 = scmp.ne.s32.totalorder %s65, %s66
      %p77 = scmp.eq.s32.totalorder %s19, 0
      %p78 = por %p76, %p77
      %p79 = scmp.ne.s32.totalorder %s65, %s66
      %p80 = scmp.eq.s32.totalorder %s20, 2
      %p81 = por %p79, %p80
      %p83 = scmp.ne.s32.totalorder %s66, %s82
      %p84 = scmp.eq.s32.totalorder %s20, 0
      %p85 = por %p83, %p84
      %s86 = ssub.s32 %s22, %s29
      %p87 = scmp.eq.s32.totalorder %s86, 0
      %s89 = sadd.s32 %s88, 1
      %s90 = scalar_select %p87, %s88, %s89
      %p93 = pneg %p87
      %p94 = scmp.eq.s32.totalorder %s14, 2
      %p95 = por %p93, %p94
      %p96 = scmp.ne.s32.totalorder %s88, %s91
      %p97 = scmp.eq.s32.totalorder %s14, 0
      %p98 = por %p96, %p97
      %p99 = scmp.ne.s32.totalorder %s88, %s91
      %p100 = scmp.eq.s32.totalorder %s19, 2
      %p101 = por %p99, %p100
      %p102 = scmp.ne.s32.totalorder %s91, %s92
      %p103 = scmp.eq.s32.totalorder %s19, 0
      %p104 = por %p102, %p103
      %p105 = scmp.ne.s32.totalorder %s91, %s92
      %p106 = scmp.eq.s32.totalorder %s20, 2
      %p107 = por %p105, %p106
      %p109 = scmp.ne.s32.totalorder %s92, %s108
      %p110 = scmp.eq.s32.totalorder %s20, 0
      %p111 = por %p109, %p110
      %s112 = ssub.s32 %s21, %s33
      %p113 = scmp.eq.s32.totalorder %s112, 0
      %s115 = sadd.s32 %s114, 1
      %s116 = scalar_select %p113, %s114, %s115
      %p119 = pneg %p113
      %p120 = scmp.eq.s32.totalorder %s14, 2
      %p121 = por %p119, %p120
      %p122 = scmp.ne.s32.totalorder %s114, %s117
      %p123 = scmp.eq.s32.totalorder %s14, 0
      %p124 = por %p122, %p123
      %p125 = scmp.ne.s32.totalorder %s114, %s117
      %p126 = scmp.eq.s32.totalorder %s19, 2
      %p127 = por %p125, %p126
      %p128 = scmp.ne.s32.totalorder %s117, %s118
      %p129 = scmp.eq.s32.totalorder %s19, 0
      %p130 = por %p128, %p129
      %p131 = scmp.ne.s32.totalorder %s117, %s118
      %p132 = scmp.eq.s32.totalorder %s20, 2
      %p133 = por %p131, %p132
      %p135 = scmp.ne.s32.totalorder %s118, %s134
      %p136 = scmp.eq.s32.totalorder %s20, 0
      %p137 = por %p135, %p136
      %p138 = scmp.le.s32.totalorder 1, %s14
      %p139 = scmp.lt.s32.totalorder %s14, 4
      %p140 = pnand %p138, %p139
      %p141 = pneg %p140
      // Predicated region
      $region9: #{projection_layer.1} parent=5 // pred_check
        _
      $region10: #{projection_layer.1} parent=5 // pred_check_branch
        %143 = sbr.rel (%p140) target = $region12
      $region11: #{projection_layer.1} parent=5 // pred_region
        %s144 = ssub.s32 %s14, 1
        // Predicated region
        $region13: #{projection_layer.1} parent=11 // pred_check
          %p145 = pneg %p52
        $region14: #{projection_layer.1} parent=11 // pred_check_branch
          %147 = sbr.rel (%p145) target = $region16
        $region15: #{projection_layer.1} parent=11 // pred_region
          %s148 = smul.u32 2, %s23
          %s150 = ssub.s32 256, 256
          %151 = vsyncadd [#allocation5], %s150
          %s152 = smul.addr %s148, 128
          %s153 = scalar_lea.hbm %s0, %s152
          %s154 = sshll.u32 [#allocation4], 4
          %s155 = int_to_ptr.vmem [resolvable:$true] %s154
          %160 = dma.hbm_to_vmem [thread:$0]  %s153, 256, %s155, [#allocation5], 128, 128, 8
        $region16: #{projection_layer.1} parent=11 // pred_fallthru
          _
      $region12: #{projection_layer.1} parent=5 // pred_fallthru
        _
      %p161 = scmp.lt.s32.totalorder %s14, 3
      // Predicated region
      $region17: #{projection_layer.1} parent=5 // pred_check
        %p162 = pneg %p161
      $region18: #{projection_layer.1} parent=5 // pred_check_branch
        %164 = sbr.rel (%p162) target = $region20
      $region19: #{projection_layer.1} parent=5 // pred_region
        // Predicated region
        $region21: #{projection_layer.1} parent=19 // pred_check
          %p165 = pneg %p72
        $region22: #{projection_layer.1} parent=19 // pred_check_branch
          %167 = sbr.rel (%p165) target = $region24
        $region23: #{projection_layer.1} parent=19 // pred_region
          %s168 = sand.u32 %s14, 1
          %s169 = scalar_lea.sflag [#allocation8], %s168
          %s170 = sand.u32 %s62, 1
          %s171 = smul.addr %s170, 128
          %s172 = scalar_lea.vmem [#allocation7], %s171
          %s173 = smul.u32 16, %s22
          %s175 = ssub.s32 2048, 2048
          %176 = vsyncadd %s169, %s175
          %s177 = smul.addr %s173, 128
          %s178 = scalar_lea.hbm %s1, %s177
          %s179 = sshll.u32 %s172, 4
          %s180 = int_to_ptr.vmem [resolvable:$true] %s179
          %185 = dma.hbm_to_vmem [thread:$0]  %s178, 2048, %s180, %s169, 128, 128, 8
        $region24: #{projection_layer.1} parent=19 // pred_fallthru
          _
        // Predicated region
        $region25: #{projection_layer.1} parent=19 // pred_check
          %p186 = pneg %p98
        $region26: #{projection_layer.1} parent=19 // pred_check_branch
          %188 = sbr.rel (%p186) target = $region28
        $region27: #{projection_layer.1} parent=19 // pred_region
          %s189 = sand.u32 %s14, 1
          %s190 = scalar_lea.sflag [#allocation8], %s189
          %s191 = sand.u32 %s88, 1
          %s192 = scalar_lea.vmem [#allocation9], %s191
          %s194 = ssub.s32 16, 16
          %195 = vsyncadd %s190, %s194
          %s196 = smul.addr %s22, 16
          %s197 = scalar_lea.hbm %s2, %s196
          %s199 = sshll.u32 %s192, 4
          %s200 = int_to_ptr.vmem [resolvable:$true] %s199
          %202 = dma.hbm_to_vmem [thread:$0]  %s197, 16, %s200, %s190
        $region28: #{projection_layer.1} parent=19 // pred_fallthru
          _
      $region20: #{projection_layer.1} parent=5 // pred_fallthru
        _
      %p203 = scmp.le.s32.totalorder 1, %s14
      %p204 = scmp.lt.s32.totalorder %s14, 4
      %p205 = pnand %p203, %p204
      %p206 = pneg %p205
      // Predicated region
      $region29: #{projection_layer.1} parent=5 // pred_check
        _
      $region30: #{projection_layer.1} parent=5 // pred_check_branch
        %208 = sbr.rel (%p205) target = $region32
      $region31: #{projection_layer.1} parent=5 // pred_region
        %s209 = ssub.s32 %s14, 1
        // Predicated region
        $region33: #{projection_layer.1} parent=31 // pred_check
          %p210 = pneg %p52
        $region34: #{projection_layer.1} parent=31 // pred_check_branch
          %212 = sbr.rel (%p210) target = $region36
        $region35: #{projection_layer.1} parent=31 // pred_region
          %213 = dma.done [#allocation5], 256
        $region36: #{projection_layer.1} parent=31 // pred_fallthru
          _
        %s214 = sand.u32 %s19, 1
        %s215 = scalar_lea.sflag [#allocation8], %s214
        %s216 = sand.u32 %s65, 1
        %s217 = smul.addr %s216, 128
        %s218 = scalar_lea.vmem [#allocation7], %s217
        // Predicated region
        $region37: #{projection_layer.1} parent=31 // pred_check
          %p219 = pneg %p78
        $region38: #{projection_layer.1} parent=31 // pred_check_branch
          %221 = sbr.rel (%p219) target = $region40
        $region39: #{projection_layer.1} parent=31 // pred_region
          %222 = dma.done %s215, 2048
        $region40: #{projection_layer.1} parent=31 // pred_fallthru
          _
        %s223 = sand.u32 %s19, 1
        %s224 = scalar_lea.sflag [#allocation8], %s223
        %s225 = sand.u32 %s91, 1
        %s226 = scalar_lea.vmem [#allocation9], %s225
        // Predicated region
        $region41: #{projection_layer.1} parent=31 // pred_check
          %p227 = pneg %p104
        $region42: #{projection_layer.1} parent=31 // pred_check_branch
          %229 = sbr.rel (%p227) target = $region44
        $region43: #{projection_layer.1} parent=31 // pred_region
          %230 = dma.done %s224, 16
        $region44: #{projection_layer.1} parent=31 // pred_fallthru
          _
        %p231 = pneg %p52
        %p232 = pneg %p49
        %s233 = sand.u32 %s19, 1
        %s234 = scalar_lea.sflag [#allocation8], %s233
        %s235 = sand.u32 %s65, 1
        %s236 = smul.addr %s235, 128
        %s237 = scalar_lea.vmem [#allocation7], %s236
        %p238 = pneg %p78
        %p239 = pneg %p75
        %s240 = sand.u32 %s19, 1
        %s241 = scalar_lea.sflag [#allocation8], %s240
        %s242 = sand.u32 %s91, 1
        %s243 = scalar_lea.vmem [#allocation9], %s242
        %p244 = pneg %p104
        %p245 = pneg %p101
        %p246 = pneg %p130
        %p247 = pneg %p127
        %s248 = smul.u32 2, %s23
        %s249 = smul.u32 16, %s24
        %s250 = smul.u32 2, %s23
        %p251 = scmp.eq.s32.totalorder %s24, 0
        // Predicated region
        $region45: #{projection_layer.1} parent=31 // pred_check
          %p252 = pneg %p251
        $region46: #{projection_layer.1} parent=31 // pred_check_branch
          %254 = sbr.rel (%p252) target = $region48
        $region47: #{projection_layer.1} parent=31 // pred_region
          %vm255 = vcmask 7168
          %256 = vst.msk [vmem:[#allocation2] sm:$0xff] %vm255, -inf
          %257 = vst.msk [vmem:[#allocation2 + $0x8] sm:$0xff] %vm255, -inf
          %258 = vst.msk [vmem:[#allocation3] sm:$0xff] %vm255, 0.0
          %259 = vst.msk [vmem:[#allocation3 + $0x8] sm:$0xff] %vm255, 0.0
        $region48: #{projection_layer.1} parent=31 // pred_fallthru
          _
        %v260 = vld [vmem:[#allocation4] sm:$0xff]
        %v261 = vld [vmem:[#allocation4 + $0x8] sm:$0xff]
        %v262 = vld [vmem:[%s218] sm:$0xff]
        %v263 = vld [vmem:[%s218 + $0x8] sm:$0xff]
        %v264 = vld [vmem:[%s218 + $0x10] sm:$0xff]
        %v265 = vld [vmem:[%s218 + $0x18] sm:$0xff]
        %v266 = vld [vmem:[%s218 + $0x20] sm:$0xff]
        %v267 = vld [vmem:[%s218 + $0x28] sm:$0xff]
        %v268 = vld [vmem:[%s218 + $0x30] sm:$0xff]
        %v269 = vld [vmem:[%s218 + $0x38] sm:$0xff]
        %v270 = vld [vmem:[%s218 + $0x40] sm:$0xff]
        %v271 = vld [vmem:[%s218 + $0x48] sm:$0xff]
        %v272 = vld [vmem:[%s218 + $0x50] sm:$0xff]
        %v273 = vld [vmem:[%s218 + $0x58] sm:$0xff]
        %v274 = vld [vmem:[%s218 + $0x60] sm:$0xff]
        %v275 = vld [vmem:[%s218 + $0x68] sm:$0xff]
        %v276 = vld [vmem:[%s218 + $0x70] sm:$0xff]
        %v277 = vld [vmem:[%s218 + $0x78] sm:$0xff]
        %v278 = vld [vmem:[%s226] sm:$0x1]
        %v280 = vlaneseq
        %v281 = vshrl.u32 %v280, 7
        %v282 = vsub.s32 0, %v281
        %v283 = vrot.slane %v278, %v282
        %vm285 = vcmask 261120
        %v287 = vsel %vm285, %v260, 0
        %v290 = vsel %vm285, %v261, 0
        %v293 = vsel %vm285, %v262, 0
        %v296 = vsel %vm285, %v263, 0
        %v299 = vsel %vm285, %v264, 0
        %v302 = vsel %vm285, %v265, 0
        %v305 = vsel %vm285, %v266, 0
        %v308 = vsel %vm285, %v267, 0
        %v311 = vsel %vm285, %v268, 0
        %v314 = vsel %vm285, %v269, 0
        %v317 = vsel %vm285, %v270, 0
        %v320 = vsel %vm285, %v271, 0
        %v323 = vsel %vm285, %v272, 0
        %v326 = vsel %vm285, %v273, 0
        %v329 = vsel %vm285, %v274, 0
        %v332 = vsel %vm285, %v275, 0
        %v335 = vsel %vm285, %v276, 0
        %v338 = vsel %vm285, %v277, 0
        %340 = vmatprep.subr.mxu0 0.0
        %341 = vmatpush1.xpose.msra.mxu0 %v293
        %342 = vmatprep.subr.mxu0 0.0
        %343 = vmatpush1.xpose.msra.mxu0 %v296
        %344 = vmatprep.subr.mxu0 0.0
        %345 = vmatpush1.xpose.msra.mxu0 %v299
        %346 = vmatprep.subr.mxu0 0.0
        %347 = vmatpush1.xpose.msra.mxu0 %v302
        %348 = vmatprep.subr.mxu0 0.0
        %349 = vmatpush1.xpose.msra.mxu0 %v305
        %350 = vmatprep.subr.mxu0 0.0
        %351 = vmatpush1.xpose.msra.mxu0 %v308
        %352 = vmatprep.subr.mxu0 0.0
        %353 = vmatpush1.xpose.msra.mxu0 %v311
        %354 = vmatprep.subr.mxu0 0.0
        %355 = vmatpush1.xpose.msra.mxu0 %v314
        %356 = vmatprep.subr.mxu0 0.0
        %357 = vmatpush1.xpose.msra.mxu0 %v317
        %358 = vmatprep.subr.mxu0 0.0
        %359 = vmatpush1.xpose.msra.mxu0 %v320
        %360 = vmatprep.subr.mxu0 0.0
        %361 = vmatpush1.xpose.msra.mxu0 %v323
        %362 = vmatprep.subr.mxu0 0.0
        %363 = vmatpush1.xpose.msra.mxu0 %v326
        %364 = vmatprep.subr.mxu0 0.0
        %365 = vmatpush1.xpose.msra.mxu0 %v329
        %366 = vmatprep.subr.mxu0 0.0
        %367 = vmatpush1.xpose.msra.mxu0 %v332
        %368 = vmatprep.subr.mxu0 0.0
        %369 = vmatpush1.xpose.msra.mxu0 %v335
        %370 = vmatprep.subr.mxu0 0.0
        %371 = vmatpush1.xpose.msra.mxu0 %v338
        %372 = vmatprep.subr.mxu0 0.0
        %373 = vmatpush1.xpose.msra.mxu0 0.0
        %374 = vmatprep.subr.mxu0 0.0
        %375 = vmatpush1.xpose.msra.mxu0 0.0
        %376 = vmatprep.subr.mxu0 0.0
        %377 = vmatpush1.xpose.msra.mxu0 0.0
        %378 = vmatprep.subr.mxu0 0.0
        %379 = vmatpush1.xpose.msra.mxu0 0.0
        %380 = vmatprep.subr.mxu0 0.0
        %381 = vmatpush1.xpose.msra.mxu0 0.0
        %382 = vmatprep.subr.mxu0 0.0
        %383 = vmatpush1.xpose.msra.mxu0 0.0
        %384 = vmatprep.subr.mxu0 0.0
        %385 = vmatpush1.xpose.msra.mxu0 0.0
        %386 = vmatprep.subr.mxu0 0.0
        %387 = vmatpush1.xpose.msra.mxu0 0.0
        %388 = vmatprep.subr.mxu0 0.0
        %389 = vmatpush1.xpose.msra.mxu0 0.0
        %390 = vmatprep.subr.mxu0 0.0
        %391 = vmatpush1.xpose.msra.mxu0 0.0
        %392 = vmatprep.subr.mxu0 0.0
        %393 = vmatpush1.xpose.msra.mxu0 0.0
        %394 = vmatprep.subr.mxu0 0.0
        %395 = vmatpush1.xpose.msra.mxu0 0.0
        %396 = vmatprep.subr.mxu0 0.0
        %397 = vmatpush1.xpose.msra.mxu0 0.0
        %398 = vmatprep.subr.mxu0 0.0
        %399 = vmatpush1.xpose.msra.mxu0 0.0
        %400 = vmatprep.subr.mxu0 0.0
        %401 = vmatpush1.xpose.msra.mxu0 0.0
        %402 = vmatprep.subr.mxu0 0.0
        %403 = vmatpush1.xpose.msra.mxu0 0.0
        %404 = vmatprep.mubr.f32.mxu0 0.0
        %405 = vmatmul.mubr.f32.gmra.mrb[0].mxu0 %v287
        %v406 = vpop.f32.mrb[0].mxu0
        %v407 = vadd.f32 %v283, %v406
        %v408 = vpop.f32.mrb[0].mxu0
        %409 = vmatprep.mubr.f32.mxu0 0.0
        %410 = vmatmul.mubr.f32.gmra.mrb[0].mxu0 %v290
        %v411 = vpop.f32.mrb[0].mxu0
        %v412 = vadd.f32 %v283, %v411
        %v413 = vpop.f32.mrb[0].mxu0
        %414 = vdwg.mxu0
        %v415 = vld [vmem:[#allocation2] sm:$0xff]
        %v416 = vld [vmem:[#allocation2 + $0x8] sm:$0xff]
        %417 = vmax.xlane.f32.xlu0 %v407
        %v418 = vpop.xlane.xlu0 %417
        %419 = vmax.xlane.f32.xlu0 %v412
        %v420 = vpop.xlane.xlu0 %419
        %v421 = vmax.f32 %v415, %v418
        %v422 = vmax.f32 %v416, %v420
        %v423 = vld [vmem:[#allocation3] sm:$0xff]
        %v424 = vld [vmem:[#allocation3 + $0x8] sm:$0xff]
        %v425 = vsub.f32 %v415, %v421
        %v426 = vsub.f32 %v416, %v422
        %v427 = vmul.f32 %v425, 1.442695
        %v428 = vpow.pop %v427
        %v429 = vmul.f32 %v426, 1.442695
        %v430 = vpow.pop %v429
        %v431 = vmul.f32 %v423, %v428
        %v432 = vmul.f32 %v424, %v430
        %434 = vset.pattern.permute.xlu0 0
        %435 = vperm.xlu0 %434, %v421
        %v436 = vpop.permute.xlu0 %435
        %439 = vset.pattern.permute.xlu0 0
        %440 = vperm.xlu0 %439, %v422
        %v441 = vpop.permute.xlu0 %440
        %v443 = vsub.f32 %v407, %v436
        %v444 = vsub.f32 %v412, %v441
        %v445 = vmul.f32 %v443, 1.442695
        %v446 = vpow.pop %v445
        %v447 = vmul.f32 %v444, 1.442695
        %v448 = vpow.pop %v447
        %449 = vadd.xlane.f32.xlu0 %v446
        %v450 = vpop.xlane.xlu0 %449
        %451 = vadd.xlane.f32.xlu0 %v448
        %v452 = vpop.xlane.xlu0 %451
        %v453 = vadd.f32 %v431, %v450
        %v454 = vadd.f32 %v432, %v452
        %vm455 = vcmask 7168
        %456 = vst.msk [vmem:[#allocation3] sm:$0xff] %vm455, %v453
        %457 = vst.msk [vmem:[#allocation3 + $0x8] sm:$0xff] %vm455, %v454
        %458 = vst.msk [vmem:[#allocation2] sm:$0xff] %vm455, %v421
        %459 = vst.msk [vmem:[#allocation2 + $0x8] sm:$0xff] %vm455, %v422
        %s460 = smul.u32 %s24, 128
        %s461 = sshra.s32 %s460, 7
        %s462 = sand.u32 %s460, 127
        %s463 = smul.addr %s461, 8
        %s464 = scalar_lea.vmem [#allocation10], %s463
        %465 = vst [vmem:[%s464] sm:$0xff] %v407
        %466 = vst [vmem:[%s464 + $0x18] sm:$0xff] %v412
        %p467 = scmp.eq.s32.totalorder %s24, 2
        // Predicated region
        $region49: #{projection_layer.1} parent=31 // pred_check
          %p468 = pneg %p467
        $region50: #{projection_layer.1} parent=31 // pred_check_branch
          %470 = sbr.rel (%p468) target = $region52
        $region51: #{projection_layer.1} parent=31 // pred_region
          %v471 = vld [vmem:[#allocation2] sm:$0xff]
          %v472 = vld [vmem:[#allocation2 + $0x8] sm:$0xff]
          %v473 = vld [vmem:[#allocation3] sm:$0xff]
          %v474 = vld [vmem:[#allocation3 + $0x8] sm:$0xff]
          %v475 = vlog2.pop %v473
          %v476 = vmul.f32 %v475, 0.6931472
          %v477 = vlog2.pop %v474
          %v478 = vmul.f32 %v477, 0.6931472
          %v479 = vadd.f32 %v471, %v476
          %v480 = vadd.f32 %v472, %v478
          %v481 = vld [vmem:[#allocation10] sm:$0xff]
          %v482 = vld [vmem:[#allocation10 + $0x8] sm:$0xff]
          %v483 = vld [vmem:[#allocation10 + $0x10] sm:$0xff]
          %v484 = vld [vmem:[#allocation10 + $0x18] sm:$0xff]
          %v485 = vld [vmem:[#allocation10 + $0x20] sm:$0xff]
          %v486 = vld [vmem:[#allocation10 + $0x28] sm:$0xff]
          %488 = vset.pattern.permute.xlu0 0
          %489 = vperm.xlu0 %488, %v479
          %v490 = vpop.permute.xlu0 %489
          %493 = vset.pattern.permute.xlu0 0
          %494 = vperm.xlu0 %493, %v480
          %v495 = vpop.permute.xlu0 %494
          %v497 = vsub.f32 %v481, %v490
          %v498 = vsub.f32 %v482, %v490
          %v499 = vsub.f32 %v483, %v490
          %v500 = vsub.f32 %v484, %v495
          %v501 = vsub.f32 %v485, %v495
          %v502 = vsub.f32 %v486, %v495
          %503 = vst [vmem:[#allocation10] sm:$0xff] %v497
          %504 = vst [vmem:[#allocation10 + $0x8] sm:$0xff] %v498
          %505 = vst [vmem:[#allocation10 + $0x10] sm:$0xff] %v499
          %506 = vst [vmem:[#allocation10 + $0x18] sm:$0xff] %v500
          %507 = vst [vmem:[#allocation10 + $0x20] sm:$0xff] %v501
          %508 = vst [vmem:[#allocation10 + $0x28] sm:$0xff] %v502
        $region52: #{projection_layer.1} parent=31 // pred_fallthru
          _
        // Predicated region
        $region53: #{projection_layer.1} parent=31 // pred_check
          %p509 = pneg %p127
        $region54: #{projection_layer.1} parent=31 // pred_check_branch
          %511 = sbr.rel (%p509) target = $region56
        $region55: #{projection_layer.1} parent=31 // pred_region
          %s512 = smul.u32 2, %s23
          %s514 = ssub.s32 768, 768
          %515 = vsyncadd [#allocation6], %s514
          %s516 = smul.addr %s512, 3
          %s517 = smul.addr %s516, 128
          %s518 = scalar_lea.hbm %s3, %s517
          %s519 = sshll.u32 [#allocation10], 4
          %s520 = int_to_ptr.vmem [resolvable:$true] %s519
          %525 = dma.vmem_to_hbm [thread:$0]  %s520, 768, %s518, [#allocation6], 384, 384, 24
        $region56: #{projection_layer.1} parent=31 // pred_fallthru
          _
        // Predicated region
        $region57: #{projection_layer.1} parent=31 // pred_check
          %p526 = pneg %p127
        $region58: #{projection_layer.1} parent=31 // pred_check_branch
          %528 = sbr.rel (%p526) target = $region60
        $region59: #{projection_layer.1} parent=31 // pred_region
          %529 = dma.done [#allocation6], 768
        $region60: #{projection_layer.1} parent=31 // pred_fallthru
          _
      $region32: #{projection_layer.1} parent=5 // pred_fallthru
        _
      %p530 = scmp.le.s32.totalorder 2, %s14
      // Predicated region
      $region61: #{projection_layer.1} parent=5 // pred_check
        %p531 = pneg %p530
      $region62: #{projection_layer.1} parent=5 // pred_check_branch
        %533 = sbr.rel (%p531) target = $region64
      $region63: #{projection_layer.1} parent=5 // pred_region
        %s534 = ssub.s32 %s14, 2
      $region64: #{projection_layer.1} parent=5 // pred_fallthru
        _
    $region6: #{projection_layer.1} parent=1 // loop_footer
      %s18 = sadd.s32 1, %s14
    $region7: #{projection_layer.1} parent=1 // loop_footer_branch
      %13 = sbr.rel target = $region3
    $region8: #{projection_layer.1} parent=1 // loop_exit
      _
    %535 = vsyncpa [#allocation5], 1
    %s536 = scalar_lea.sflag [#allocation5], 1
    %537 = vsyncpa %s536, 1
    %538 = vsyncpa [#allocation8], 1
    %s539 = scalar_lea.sflag [#allocation8], 1
    %540 = vsyncpa %s539, 1
    %541 = vsyncpa [#allocation6], 1
    %s542 = scalar_lea.sflag [#allocation6], 1
    %543 = vsyncpa %s542, 1

</llo_original>
